<compile_context>
chip_gen: v5e
topology: v5e:2x2
jax: 0.10.0
libtpu: 0.0.40
codegen_flags: <defaults>
</compile_context>

<pallas_src>
import functools
import math

import jax
import jax.numpy as jnp
from jax import lax
from jax.experimental import pallas as pl
from jax.experimental.pallas import tpu as pltpu


_DEFAULTS = {"arcface": (64.0, 0.5), "sphereface": (64.0, 1.35), "cosface": (30.0, 0.4)}


def _round_up(v, mult):
    return ((v + mult - 1) // mult) * mult


def _lane_fold(ex, lane_width):
    """Fold (tn, tc) -> (tn, lane_width) with lane-parallel VALU adds only."""
    tn, tc = ex.shape
    if lane_width == 1:
        return jnp.sum(ex, axis=1, keepdims=True)
    n_slabs = tc // lane_width
    slabs = [ex[:, k * lane_width:(k + 1) * lane_width] for k in range(n_slabs)]
    # Pairwise tree to keep the dependence chain short.
    while len(slabs) > 1:
        nxt = []
        for a in range(0, len(slabs) - 1, 2):
            nxt.append(slabs[a] + slabs[a + 1])
        if len(slabs) % 2:
            nxt.append(slabs[-1])
        slabs = nxt
    return slabs[0]


def _angular_penalty_kernel(x_ref, tgt_ref, out_ref, sum_ref, *,
                            loss_type, s, m, eps, n_classes, block_c, lane_width):
    j = pl.program_id(1)                    # class-tile index (reduction, last axis)
    num_j = pl.num_programs(1)

    @pl.when(j == 0)
    def _init():
        sum_ref[...] = jnp.zeros_like(sum_ref)

    def _accumulate(mask_tail):
        wf32 = x_ref[...].astype(jnp.float32)          # per-tile cast (bf16 OK)
        ex = jnp.exp(wf32 * s)                         # |x|<=1 -> no f32 overflow
        if mask_tail:
            rem = n_classes % block_c                  # static; only last tile
            col = lax.broadcasted_iota(jnp.int32, ex.shape, 1)
            ex = jnp.where(col < rem, ex, 0.0)
        sum_ref[...] += _lane_fold(ex, lane_width)

    if n_classes % block_c != 0:
        # Only the last class tile pays for the padded-column mask.
        @pl.when(j == num_j - 1)
        def _tail():
            _accumulate(True)

        @pl.when(j != num_j - 1)
        def _full():
            _accumulate(False)
    else:
        _accumulate(False)

    @pl.when(j == num_j - 1)
    def _finalize():
        total = jnp.sum(sum_ref[...], axis=1, keepdims=True)   # single 128->1 reduce
        t = tgt_ref[...]                                        # (tn, 1) target logit
        if loss_type == "cosface":
            numerator = s * (t - m)
        elif loss_type == "arcface":
            # s*cos(arccos(t)+m) == s*(t*cos(m) - sqrt(1-t^2)*sin(m))
            tcl = jnp.clip(t, -1.0 + eps, 1.0 - eps)
            numerator = s * (tcl * math.cos(m)
                             - jnp.sqrt(1.0 - tcl * tcl) * math.sin(m))
        else:  # sphereface
            tcl = jnp.clip(t, -1.0 + eps, 1.0 - eps)
            numerator = s * jnp.cos(m * jnp.arccos(tcl))

        # Exclude the label column.  total and exp(s*t) come from the same
        # f32 values, so the clamp only papers over last-bit cancellation.
        excl = jnp.maximum(total - jnp.exp(s * t), 0.0)
        denom = jnp.exp(numerator) + excl
        out_ref[...] = numerator - jnp.log(denom)


def angular_penalty_sm_loss(x, labels, loss_type="cosface", eps=1e-7,
                            s=None, m=None, block_n=None, block_c=None):
    loss_type = loss_type.lower()
    assert loss_type in _DEFAULTS
    ds, dm = _DEFAULTS[loss_type]
    s = ds if s is None else float(s)     # explicit 0.0 is respected
    m = dm if m is None else float(m)

    n, c = x.shape
    labels = labels.astype(jnp.int32)
    # TODO(synk): torch asserts min(labels) >= 0 at runtime; not checked here.

    # O(N) target gather stays in XLA; the kernel only streams x.
    target = jnp.take_along_axis(x, labels[:, None], axis=1).astype(jnp.float32)

    # --- tile selection ----------------------------------------------------
    if block_c is not None:
        tc = min(int(block_c), c)
    else:
        tc = c if c <= 4096 else 4096
    if tc < c:
        assert tc % 128 == 0, "block_c must be a multiple of 128 when tiling classes"

    if block_n is not None:
        tn = min(int(block_n), n)
    elif n <= 8:
        tn = n
    elif n <= 512:
        # >= 2 batch tiles so the "parallel" axis can shard across v7x's 2 TCs.
        tn = min(256, _round_up(pl.cdiv(n, 2), 8))
    else:
        tn = 256
    if tn > n:
        tn = n
    if tn < n:
        assert tn % 8 == 0, "block_n must be a multiple of 8 when tiling the batch"

    lane_width = 128 if (tc % 128 == 0 and tc >= 128) else 1

    kernel = functools.partial(
        _angular_penalty_kernel,
        loss_type=loss_type, s=s, m=m, eps=float(eps),
        n_classes=c, block_c=tc, lane_width=lane_width)

    # Raise the scoped-VMEM limit only when big tiles actually need it
    # (double-buffered x blocks + in-kernel f32 temporaries).
    est_bytes = 2 * tn * tc * x.dtype.itemsize + 2 * tn * tc * 4
    ckwargs = dict(dimension_semantics=("parallel", "arbitrary"))
    if est_bytes > 12 * 1024 * 1024:
        ckwargs["vmem_limit_bytes"] = 48 * 1024 * 1024

    per_row = pl.pallas_call(
        kernel,
        out_shape=jax.ShapeDtypeStruct((n, 1), jnp.float32),
        grid=(pl.cdiv(n, tn), pl.cdiv(c, tc)),
        in_specs=[
            pl.BlockSpec((tn, tc), lambda i, j: (i, j)),   # x, native dtype
            pl.BlockSpec((tn, 1), lambda i, j: (i, 0)),    # target logit (f32)
        ],
        out_specs=pl.BlockSpec((tn, 1), lambda i, j: (i, 0)),
        scratch_shapes=[pltpu.VMEM((tn, lane_width), jnp.float32)],  # lane-parallel sum
        compiler_params=pltpu.CompilerParams(**ckwargs),
    )(x, target)

    return -jnp.mean(per_row[:, 0])


def _reference_loss(x, labels, loss_type="cosface", eps=1e-7, s=None, m=None):
    # Pure-JAX reference mirroring the torch code exactly (unshifted).
    loss_type = loss_type.lower()
    ds, dm = _DEFAULTS[loss_type]
    s = ds if s is None else float(s)
    m = dm if m is None else float(m)

    wf = x.astype(jnp.float32)
    n, c = wf.shape
    target = wf[jnp.arange(n), labels]
    if loss_type == "cosface":
        numerator = s * (target - m)
    elif loss_type == "arcface":
        numerator = s * jnp.cos(jnp.arccos(jnp.clip(target, -1.0 + eps, 1.0 - eps)) + m)
    else:
        numerator = s * jnp.cos(m * jnp.arccos(jnp.clip(target, -1.0 + eps, 1.0 - eps)))
    onehot = jax.nn.one_hot(labels, c, dtype=jnp.float32)
    excl_sum = jnp.sum(jnp.exp(s * wf) * (1.0 - onehot), axis=1)
    denominator = jnp.exp(numerator) + excl_sum
    L = numerator - jnp.log(denominator)
    return -jnp.mean(L)


if __name__ == "__main__":
    key = jax.random.PRNGKey(0)
    kx, kl, kx2, kl2 = jax.random.split(key, 4)
    ok = True

    # (1) single-tile case: batch=8, classes=16; cosine logits in [-1, 1].
    n, c = 8, 16
    x = jnp.tanh(jax.random.normal(kx, (n, c), dtype=jnp.float32))
    labels = jax.random.randint(kl, (n,), 0, c, dtype=jnp.int32)
    for lt in ("cosface", "arcface", "sphereface"):
        out = jax.block_until_ready(angular_penalty_sm_loss(x, labels, loss_type=lt))
        ref = _reference_loss(x, labels, loss_type=lt)
        ok &= bool(jnp.allclose(out, ref, rtol=1e-3, atol=1e-3))

    # (2) multi-tile case: bf16 input, partial batch tile and masked partial
    #     class tile, exercising the gated tail path + lane-parallel accumulator.
    n, c = 12, 300
    x2 = jnp.tanh(jax.random.normal(kx2, (n, c), dtype=jnp.float32)).astype(jnp.bfloat16)
    labels2 = jax.random.randint(kl2, (n,), 0, c, dtype=jnp.int32)
    out = jax.block_until_ready(
        angular_penalty_sm_loss(x2, labels2, loss_type="cosface",
                                block_n=8, block_c=128))
    ref = _reference_loss(x2, labels2, loss_type="cosface")
    ok &= bool(jnp.allclose(out, ref, rtol=1e-2, atol=1e-2))

    if ok:
        print("KERNEL_OK")
    else:
        raise SystemExit("mismatch between pallas kernel and reference")
</pallas_src>

<mosaic_0001>
module attributes {stable_mosaic.version = 11 : i64} {
  func.func @_angular_penalty_kernel(%arg0: i32, %arg1: i32, %arg2: memref<8x16xf32, #tpu.memory_space<vmem>>, %arg3: memref<8x1xf32, #tpu.memory_space<vmem>>, %arg4: memref<8x1xf32, #tpu.memory_space<vmem>>, %arg5: memref<8x1xf32, #tpu.memory_space<vmem>>) attributes {dimension_semantics = [#tpu.dimension_semantics<parallel>, #tpu.dimension_semantics<arbitrary>], iteration_bounds = array<i64: 1, 1>, scalar_prefetch = 0 : i64, scratch_operands = 1 : i64, tpu.core_type = #tpu.core_type<tc>, window_params = [{transform_indices = @transform_0, window_bounds = array<i64: 8, 16>}, {transform_indices = @transform_1, window_bounds = array<i64: 8, 1>}, {transform_indices = @transform_2, window_bounds = array<i64: 8, 1>}]} {
    %c0_i32 = arith.constant 0 : i32
    %0 = arith.cmpi eq, %arg1, %c0_i32 : i32
    %1 = arith.extui %0 : i1 to i32
    %c0_i32_0 = arith.constant 0 : i32
    %2 = arith.cmpi ne, %1, %c0_i32_0 : i32
    scf.if %2 {
      %cst_9 = arith.constant 0.000000e+00 : f32
      %15 = vector.broadcast %cst_9 : f32 to vector<8x1xf32>
      %c0_10 = arith.constant 0 : index
      %c0_11 = arith.constant 0 : index
      %16 = vector.load %arg5[%c0_10, %c0_11] : memref<8x1xf32, #tpu.memory_space<vmem>>, vector<8x1xf32>
      tpu.vector_store %arg5[%c0_10, %c0_11], %15 {strides = array<i32>} : memref<8x1xf32, #tpu.memory_space<vmem>>, vector<8x1xf32>,
    } else {
    }
    %c0 = arith.constant 0 : index
    %c0_1 = arith.constant 0 : index
    %3 = vector.load %arg2[%c0, %c0_1] : memref<8x16xf32, #tpu.memory_space<vmem>>, vector<8x16xf32>
    %cst = arith.constant 3.000000e+01 : f32
    %4 = vector.broadcast %cst : f32 to vector<8x16xf32>
    %5 = arith.mulf %3, %4 : vector<8x16xf32>
    %6 = math.exp %5 : vector<8x16xf32>
    %c0_2 = arith.constant 0 : index
    %c0_3 = arith.constant 0 : index
    %7 = vector.load %arg5[%c0_2, %c0_3] : memref<8x1xf32, #tpu.memory_space<vmem>>, vector<8x1xf32>
    %cst_4 = arith.constant dense<0.000000e+00> : vector<8xf32>
    %8 = vector.multi_reduction <add>, %6, %cst_4 [1] : vector<8x16xf32> to vector<8xf32>
    %9 = vector.shape_cast %8 : vector<8xf32> to vector<8x1xf32>
    %10 = arith.addf %7, %9 : vector<8x1xf32>
    %c0_5 = arith.constant 0 : index
    %c0_6 = arith.constant 0 : index
    %11 = vector.load %arg5[%c0_5, %c0_6] : memref<8x1xf32, #tpu.memory_space<vmem>>, vector<8x1xf32>
    tpu.vector_store %arg5[%c0_5, %c0_6], %10 {strides = array<i32>} : memref<8x1xf32, #tpu.memory_space<vmem>>, vector<8x1xf32>,
    %c0_i32_7 = arith.constant 0 : i32
    %12 = arith.cmpi eq, %arg1, %c0_i32_7 : i32
    %13 = arith.extui %12 : i1 to i32
    %c0_i32_8 = arith.constant 0 : i32
    %14 = arith.cmpi ne, %13, %c0_i32_8 : i32
    scf.if %14 {
      %c0_9 = arith.constant 0 : index
      %c0_10 = arith.constant 0 : index
      %15 = vector.load %arg5[%c0_9, %c0_10] : memref<8x1xf32, #tpu.memory_space<vmem>>, vector<8x1xf32>
      %cst_11 = arith.constant dense<0.000000e+00> : vector<8xf32>
      %16 = vector.multi_reduction <add>, %15, %cst_11 [1] : vector<8x1xf32> to vector<8xf32>
      %17 = vector.shape_cast %16 : vector<8xf32> to vector<8x1xf32>
      %c0_12 = arith.constant 0 : index
      %c0_13 = arith.constant 0 : index
      %18 = vector.load %arg3[%c0_12, %c0_13] : memref<8x1xf32, #tpu.memory_space<vmem>>, vector<8x1xf32>
      %cst_14 = arith.constant 4.000000e-01 : f32
      %19 = vector.broadcast %cst_14 : f32 to vector<8x1xf32>
      %20 = arith.subf %18, %19 : vector<8x1xf32>
      %cst_15 = arith.constant 3.000000e+01 : f32
      %21 = vector.broadcast %cst_15 : f32 to vector<8x1xf32>
      %22 = arith.mulf %21, %20 : vector<8x1xf32>
      %cst_16 = arith.constant 3.000000e+01 : f32
      %23 = vector.broadcast %cst_16 : f32 to vector<8x1xf32>
      %24 = arith.mulf %23, %18 : vector<8x1xf32>
      %25 = math.exp %24 : vector<8x1xf32>
      %26 = arith.subf %17, %25 : vector<8x1xf32>
      %cst_17 = arith.constant 0.000000e+00 : f32
      %27 = vector.broadcast %cst_17 : f32 to vector<8x1xf32>
      %28 = arith.maximumf %26, %27 : vector<8x1xf32>
      %29 = math.exp %22 : vector<8x1xf32>
      %30 = arith.addf %29, %28 : vector<8x1xf32>
      %31 = math.log %30 : vector<8x1xf32>
      %32 = arith.subf %22, %31 : vector<8x1xf32>
      %c0_18 = arith.constant 0 : index
      %c0_19 = arith.constant 0 : index
      %33 = vector.load %arg4[%c0_18, %c0_19] : memref<8x1xf32, #tpu.memory_space<vmem>>, vector<8x1xf32>
      tpu.vector_store %arg4[%c0_18, %c0_19], %32 {strides = array<i32>} : memref<8x1xf32, #tpu.memory_space<vmem>>, vector<8x1xf32>,
    } else {
    }
    return
  }
  func.func @transform_0(%arg0: i32, %arg1: i32) -> (i32, i32) {
    %c0_i32 = arith.constant 0 : i32
    return %arg0, %arg1 : i32, i32
  }
  func.func @transform_1(%arg0: i32, %arg1: i32) -> (i32, i32) {
    %c0_i32 = arith.constant 0 : i32
    %c0_i32_0 = arith.constant 0 : i32
    return %arg0, %c0_i32 : i32, i32
  }
  func.func @transform_2(%arg0: i32, %arg1: i32) -> (i32, i32) {
    %c0_i32 = arith.constant 0 : i32
    %c0_i32_0 = arith.constant 0 : i32
    return %arg0, %c0_i32 : i32, i32
  }
}

</mosaic_0001>

<llo_original>
// kernel: tpu_custom_call.1
$region0: #{tpu_custom_call.1}
  #allocation0 [shape = 'u32[]', space=smem, size = 0x4, offset = 0x4, fixed_abs, tag = 'smem constant byte address 0x4 - core index']
  #allocation1 [shape = 'u32[72,128]{1,0:T(1,128)}', space=vmem, size = 0x9000, scoped, tag = 'internal scratch']
  #allocation2 [shape = 'f32[8,1]{1,0:T(8,128)}', space=vmem, size = 0x1000, scoped, tag = 'scratch operand']
  %s0 = inlined_call_operand.vmem [shape: f32[8,16], index: 0, kind: input, shape index: {}]
  %s1 = inlined_call_operand.vmem [shape: f32[8,1], index: 1, kind: input, shape index: {}]
  %s2 = inlined_call_operand.vmem [shape: f32[8,1], index: 2, kind: output, shape index: {}]
  %s3 = sld [smem:[#allocation0]]
  $region26: #{tpu_custom_call.1} parent=0
    _
  %s5 = ssub.s32 1, %s3
  %s6 = scalar_select 0, %s5, %s3
  // Predicated region
  $region2: #{tpu_custom_call.1} parent=0 // pred_check
    _
  $region3: #{tpu_custom_call.1} parent=0 // pred_check_branch
    %8 = sbr.rel (0) target = $region5
  $region4: #{tpu_custom_call.1} parent=0 // pred_region
    _
  $region5: #{tpu_custom_call.1} parent=0 // pred_fallthru
    _
  // Predicated region
  $region6: #{tpu_custom_call.1} parent=0 // pred_check
    _
  $region7: #{tpu_custom_call.1} parent=0 // pred_check_branch
    %10 = sbr.rel (0) target = $region9
  $region8: #{tpu_custom_call.1} parent=0 // pred_region
    _
  $region9: #{tpu_custom_call.1} parent=0 // pred_fallthru
    _
  %p11 = scmp.eq.s32.totalorder 0, 0
  // Predicated region
  $region10: #{tpu_custom_call.1} parent=0 // pred_check
    %p12 = pneg %p11
  $region11: #{tpu_custom_call.1} parent=0 // pred_check_branch
    %14 = sbr.rel (%p12) target = $region13
  $region12: #{tpu_custom_call.1} parent=0 // pred_region
    %vm15 = vcmask 7168
    %16 = vst.msk [vmem:[#allocation2] sm:$0xff] %vm15, 0.0
  $region13: #{tpu_custom_call.1} parent=0 // pred_fallthru
    _
  %v17 = vld [vmem:[%s0] sm:$0xff]
  %v18 = vmul.f32 %v17, 30.0
  %v19 = vmul.f32 %v18, 1.442695
  %v20 = vpow.pop %v19
  %v21 = vld [vmem:[#allocation2] sm:$0xff]
  %vm22 = vcmask 130048
  %v23 = vsel %vm22, %v20, 0.0
  %24 = vadd.xlane.f32.xlu0 %v23
  %v25 = vpop.xlane.xlu0 %24
  %v26 = vadd.f32 %v21, %v25
  %vm27 = vcmask 7168
  %28 = vst.msk [vmem:[#allocation2] sm:$0xff] %vm27, %v26
  // Predicated region
  $region14: #{tpu_custom_call.1} parent=0 // pred_check
    %p29 = pneg %p11
  $region15: #{tpu_custom_call.1} parent=0 // pred_check_branch
    %31 = sbr.rel (%p29) target = $region17
  $region16: #{tpu_custom_call.1} parent=0 // pred_region
    %v32 = vld [vmem:[#allocation2] sm:$0xff]
    %v33 = vadd.f32 %v32, 0.0
    %v34 = vld [vmem:[%s1] sm:$0xff]
    %v35 = vsub.f32 %v34, 0.4
    %v36 = vmul.f32 %v35, 30.0
    %v37 = vmul.f32 %v34, 30.0
    %v38 = vmul.f32 %v37, 1.442695
    %v39 = vpow.pop %v38
    %v40 = vsub.f32 %v33, %v39
    %v41 = vmax.f32 %v40, 0.0
    %v42 = vmul.f32 %v36, 1.442695
    %v43 = vpow.pop %v42
    %v44 = vadd.f32 %v43, %v41
    %v45 = vlog2.pop %v44
    %v46 = vmul.f32 %v45, 0.6931472
    %v47 = vsub.f32 %v36, %v46
    %48 = vst.msk [vmem:[%s2] sm:$0xff] %vm27, %v47
  $region17: #{tpu_custom_call.1} parent=0 // pred_fallthru
    _
  // Predicated region
  $region18: #{tpu_custom_call.1} parent=0 // pred_check
    _
  $region19: #{tpu_custom_call.1} parent=0 // pred_check_branch
    %50 = sbr.rel (0) target = $region21
  $region20: #{tpu_custom_call.1} parent=0 // pred_region
    _
  $region21: #{tpu_custom_call.1} parent=0 // pred_fallthru
    _
  // Predicated region
  $region22: #{tpu_custom_call.1} parent=0 // pred_check
    _
  $region23: #{tpu_custom_call.1} parent=0 // pred_check_branch
    %52 = sbr.rel (0) target = $region25
  $region24: #{tpu_custom_call.1} parent=0 // pred_region
    _
  $region25: #{tpu_custom_call.1} parent=0 // pred_fallthru
    _

</llo_original>
